<compile_context>
chip_gen: v5e
topology: v5e:2x2
jax: 0.10.0
libtpu: 0.0.40
codegen_flags: <defaults>
</compile_context>

<pallas_src>
import functools

import jax
import jax.numpy as jnp
from jax.experimental import pallas as pl
from jax.experimental.pallas import tpu as pltpu


# (1024, 128) f32 block = 512 KiB/buffer; in+out double-buffered = 2 MiB of
# VMEM -> comfortably inside the scoped VMEM budget on v5e/v6e/v7x while being
# large enough to sit at ~85% of the HBM roofline.
_TILE_ROWS = 1024
_LANES = 128


def _dropout_kernel(seed_ref, x_ref, o_ref, *, threshold, scale):
    """Inverted dropout on one (tile_r, 128) VMEM tile.

    seed_ref : SMEM int32[1]   base seed (already mixed per modality)
    x_ref    : VMEM (R, 128)   input tile
    o_ref    : VMEM (R, 128)   output tile
    threshold: static int, round(p * 2**31); keep element iff hash31 >= threshold
    scale    : static float, 1 / (1 - p)
    """
    tile_r, tile_c = x_ref.shape

    # Global element index of every lane in this tile (unique across the grid,
    # so every tile gets a distinct dropout mask with a single seed).
    row = jax.lax.broadcasted_iota(jnp.int32, (tile_r, tile_c), 0)
    col = jax.lax.broadcasted_iota(jnp.int32, (tile_r, tile_c), 1)
    base_row = pl.program_id(0) * tile_r
    idx = ((base_row + row) * tile_c + col).astype(jnp.uint32)

    # splitmix32-style mixer of (global index, seed)  -> well-decorrelated bits.
    seed_u = seed_ref[0].astype(jnp.uint32)
    h = idx + seed_u * jnp.uint32(0x9E3779B9)
    h = h ^ (h >> jnp.uint32(16))
    h = h * jnp.uint32(0x7FEB352D)
    h = h ^ (h >> jnp.uint32(15))
    h = h * jnp.uint32(0x846CA68B)
    h = h ^ (h >> jnp.uint32(16))

    # 31-bit uniform integer vs. static threshold: keep prob = 1 - p.
    r31 = (h >> jnp.uint32(1)).astype(jnp.int32)
    keep = r31 >= jnp.int32(threshold)

    x = x_ref[...]
    # `scale` is a weak-typed Python float -> math stays in the input dtype
    # (bf16-native on v6e/v7x, f32 on f32 inputs).
    o_ref[...] = jnp.where(keep, x * scale, jnp.zeros_like(x)).astype(o_ref.dtype)


def pallas_dropout(x, p, seed):
    """F.dropout(x, p) (training semantics) via a tiled, pipelined Pallas kernel."""
    p = float(p)
    if p <= 0.0 or x.size == 0:
        return x
    if p >= 1.0:
        return jnp.zeros_like(x)

    n = x.size
    rows = -(-n // _LANES)
    padded_n = rows * _LANES

    # Pad only when the element count is ragged w.r.t. the 128-lane width.
    if padded_n == n:
        x2 = x.reshape(rows, _LANES)
    else:
        x2 = jnp.pad(x.reshape(-1), (0, padded_n - n)).reshape(rows, _LANES)

    # Tile rows: big for pipelining, but no bigger than the (8-aligned) array.
    tile_r = min(_TILE_ROWS, -(-rows // 8) * 8)
    grid = (pl.cdiv(rows, tile_r),)

    threshold = min(int(round(p * (1 << 31))), (1 << 31) - 1)
    scale = 1.0 / (1.0 - p)

    out2 = pl.pallas_call(
        functools.partial(_dropout_kernel, threshold=threshold, scale=scale),
        out_shape=jax.ShapeDtypeStruct((rows, _LANES), x.dtype),
        grid=grid,
        in_specs=[
            pl.BlockSpec(memory_space=pltpu.SMEM),             # seed scalar
            pl.BlockSpec((tile_r, _LANES), lambda i: (i, 0)),  # input tile
        ],
        out_specs=pl.BlockSpec((tile_r, _LANES), lambda i: (i, 0)),
        compiler_params=pltpu.CompilerParams(
            dimension_semantics=("parallel",)),
    )(jnp.asarray([seed], jnp.int32), x2)

    out_flat = out2.reshape(-1)
    if padded_n != n:
        out_flat = out_flat[:n]
    return out_flat.reshape(x.shape)


class MultiDropout:
    """JAX/Pallas port of MultiDropout (stateless, no parameters)."""

    def __init__(self, p=0.5, inplace=False):
        if p < 0 or p > 1:
            raise ValueError(
                f"dropout probability has to be between 0 and 1, but got {p}")
        self.p = p
        self.inplace = inplace
        self.training = True

    def eval(self):
        self.training = False
        return self

    def train(self):
        self.training = True
        return self

    def __call__(self, *mods, seed=0):
        mods = list(mods)
        # Skip the kernel whenever its output would be discarded:
        #   - eval mode: identity.
        #   - p == 0: F.dropout is identity.
        #   - inplace=False: PyTorch reassigns the loop variable only, so the
        #     returned tensors are unchanged (quirk preserved, zero HBM traffic).
        if (not self.training) or self.p == 0.0 or (not self.inplace):
            return mods
        for i, m in enumerate(mods):
            # Large odd multiplier decorrelates per-modality seeds.
            mod_seed = (int(seed) + i * 1000003) & 0x7FFFFFFF
            mods[i] = pallas_dropout(m, self.p, mod_seed)
        return mods

    def __repr__(self):
        inplace_str = ', inplace' if self.inplace else ''
        return self.__class__.__name__ + '(' + 'p=' + str(self.p) + inplace_str + ')'


if __name__ == "__main__":
    key = jax.random.PRNGKey(0)
    k1, k2 = jax.random.split(key)

    # Two modalities: an NCHW image tensor and a (B, S, D) sequence tensor.
    x_img = jax.random.normal(k1, (2, 4, 16, 16), dtype=jnp.float32)
    x_seq = jax.random.normal(k2, (2, 8, 32), dtype=jnp.float32)

    # Exercise the Pallas dropout kernel (training, inplace=True path).
    md_inplace = MultiDropout(p=0.5, inplace=True)
    out_img, out_seq = md_inplace(x_img, x_seq, seed=123)
    out_img = jax.block_until_ready(out_img)
    out_seq = jax.block_until_ready(out_seq)

    # Basic sanity checks on dropout semantics.
    assert out_img.shape == x_img.shape and out_seq.shape == x_seq.shape
    zero_frac = float(jnp.mean(out_img == 0.0))
    assert 0.3 < zero_frac < 0.7, f"unexpected drop fraction {zero_frac}"
    # Kept elements are scaled by 1/(1-p) = 2.
    kept = out_img != 0.0
    assert bool(jnp.allclose(jnp.where(kept, out_img, 0.0),
                             jnp.where(kept, 2.0 * x_img, 0.0), atol=1e-5))

    # Default module (inplace=False): outputs pass through unchanged,
    # matching the original PyTorch forward exactly (kernel skipped).
    md_default = MultiDropout(p=0.5, inplace=False)
    same_img, same_seq = md_default(x_img, x_seq, seed=7)
    assert bool(jnp.array_equal(same_img, x_img))
    assert bool(jnp.array_equal(same_seq, x_seq))

    # Eval mode: identity.
    md_eval = MultiDropout(p=0.5, inplace=True).eval()
    e_img, _ = md_eval(x_img, x_seq)
    assert bool(jnp.array_equal(e_img, x_img))

    print("KERNEL_OK")
</pallas_src>

<mosaic_0001>
module attributes {stable_mosaic.version = 11 : i64} {
  func.func @_dropout_kernel(%arg0: i32, %arg1: memref<1xi32, #tpu.memory_space<smem>>, %arg2: memref<16x128xf32, #tpu.memory_space<vmem>>, %arg3: memref<16x128xf32, #tpu.memory_space<vmem>>) attributes {dimension_semantics = [#tpu.dimension_semantics<parallel>], iteration_bounds = array<i64: 1>, scalar_prefetch = 0 : i64, scratch_operands = 0 : i64, tpu.core_type = #tpu.core_type<tc>, window_params = [{transform_indices = @transform_0, window_bounds = array<i64: 1>}, {transform_indices = @transform_1, window_bounds = array<i64: 16, 128>}, {transform_indices = @transform_2, window_bounds = array<i64: 16, 128>}]} {
    %0 = tpu.iota {dimensions = array<i32: 0>} : vector<16x128xi32>
    %1 = tpu.iota {dimensions = array<i32: 1>} : vector<16x128xi32>
    %c16_i32 = arith.constant 16 : i32
    %2 = arith.muli %arg0, %c16_i32 : i32
    %3 = vector.broadcast %2 : i32 to vector<16x128xi32>
    %4 = arith.addi %3, %0 : vector<16x128xi32>
    %c128_i32 = arith.constant 128 : i32
    %5 = vector.broadcast %c128_i32 : i32 to vector<16x128xi32>
    %6 = arith.muli %4, %5 : vector<16x128xi32>
    %7 = arith.addi %6, %1 : vector<16x128xi32>
    %c0 = arith.constant 0 : index
    %8 = memref.load %arg1[%c0] : memref<1xi32, #tpu.memory_space<smem>>
    %c-1640531527_i32 = arith.constant -1640531527 : i32
    %9 = arith.muli %8, %c-1640531527_i32 : i32
    %10 = vector.broadcast %9 : i32 to vector<16x128xi32>
    %11 = arith.addi %7, %10 : vector<16x128xi32>
    %c16_i32_0 = arith.constant 16 : i32
    %12 = vector.broadcast %c16_i32_0 : i32 to vector<16x128xi32>
    %13 = arith.shrui %11, %12 : vector<16x128xi32>
    %14 = arith.xori %11, %13 : vector<16x128xi32>
    %c2146121005_i32 = arith.constant 2146121005 : i32
    %15 = vector.broadcast %c2146121005_i32 : i32 to vector<16x128xi32>
    %16 = arith.muli %14, %15 : vector<16x128xi32>
    %c15_i32 = arith.constant 15 : i32
    %17 = vector.broadcast %c15_i32 : i32 to vector<16x128xi32>
    %18 = arith.shrui %16, %17 : vector<16x128xi32>
    %19 = arith.xori %16, %18 : vector<16x128xi32>
    %c-2073254261_i32 = arith.constant -2073254261 : i32
    %20 = vector.broadcast %c-2073254261_i32 : i32 to vector<16x128xi32>
    %21 = arith.muli %19, %20 : vector<16x128xi32>
    %c16_i32_1 = arith.constant 16 : i32
    %22 = vector.broadcast %c16_i32_1 : i32 to vector<16x128xi32>
    %23 = arith.shrui %21, %22 : vector<16x128xi32>
    %24 = arith.xori %21, %23 : vector<16x128xi32>
    %c1_i32 = arith.constant 1 : i32
    %25 = vector.broadcast %c1_i32 : i32 to vector<16x128xi32>
    %26 = arith.shrui %24, %25 : vector<16x128xi32>
    %c1073741824_i32 = arith.constant 1073741824 : i32
    %27 = vector.broadcast %c1073741824_i32 : i32 to vector<16x128xi32>
    %28 = arith.cmpi sge, %26, %27 : vector<16x128xi32>
    %c0_2 = arith.constant 0 : index
    %c0_3 = arith.constant 0 : index
    %29 = vector.load %arg2[%c0_2, %c0_3] : memref<16x128xf32, #tpu.memory_space<vmem>>, vector<16x128xf32>
    %cst = arith.constant 2.000000e+00 : f32
    %30 = vector.broadcast %cst : f32 to vector<16x128xf32>
    %31 = arith.mulf %29, %30 : vector<16x128xf32>
    %cst_4 = arith.constant 0.000000e+00 : f32
    %32 = vector.broadcast %cst_4 : f32 to vector<16x128xf32>
    %33 = arith.select %28, %31, %32 : vector<16x128xi1>, vector<16x128xf32>
    %c0_5 = arith.constant 0 : index
    %c0_6 = arith.constant 0 : index
    %34 = vector.load %arg3[%c0_5, %c0_6] : memref<16x128xf32, #tpu.memory_space<vmem>>, vector<16x128xf32>
    tpu.vector_store %arg3[%c0_5, %c0_6], %33 {strides = array<i32>} : memref<16x128xf32, #tpu.memory_space<vmem>>, vector<16x128xf32>,
    return
  }
  func.func @transform_0(%arg0: i32) -> i32 {
    %c0_i32 = arith.constant 0 : i32
    %c0_i32_0 = arith.constant 0 : i32
    return %c0_i32 : i32
  }
  func.func @transform_1(%arg0: i32) -> (i32, i32) {
    %c0_i32 = arith.constant 0 : i32
    %c0_i32_0 = arith.constant 0 : i32
    return %arg0, %c0_i32 : i32, i32
  }
  func.func @transform_2(%arg0: i32) -> (i32, i32) {
    %c0_i32 = arith.constant 0 : i32
    %c0_i32_0 = arith.constant 0 : i32
    return %arg0, %c0_i32 : i32, i32
  }
}

</mosaic_0001>

<llo_original>
// kernel: tpu_custom_call.1
$region0: #{tpu_custom_call.1}
  #allocation0 [shape = 'u32[]', space=smem, size = 0x4, offset = 0x4, fixed_abs, tag = 'smem constant byte address 0x4 - core index']
  #allocation1 [shape = 'u32[72,128]{1,0:T(1,128)}', space=vmem, size = 0x9000, scoped, tag = 'internal scratch']
  #allocation2 [shape = 's32[1]{0:T(128)S(6)}', space=smem, size = 0x200, scoped, tag = 'scoped memory for tpu_custom_call.1']
  %s0 = inlined_call_operand.<no memory space> [shape: s32[1], index: 0, kind: input, shape index: {}]
  %s1 = inlined_call_operand.hbm [shape: f32[16,128], index: 1, kind: input, shape index: {}]
  %s2 = inlined_call_operand.hbm [shape: f32[16,128], index: 2, kind: output, shape index: {}]
  %s3 = sld [smem:[#allocation0]]
  $region22: #{tpu_custom_call.1} parent=0
    _
  %s5 = ssub.s32 1, %s3
  %s6 = scalar_select 0, %s5, %s3
  %7 = sst [smem:[#allocation2]] %s0
  $region1: #{tpu_custom_call.1} parent=0
    #allocation3 [shape = 'u8[8192]{0}', space=vmem, size = 0x2000, scoped, tag = 'input window, operand 1, single buffered']
    #allocation4 [shape = 's32[1]{0}', space=sflag, size = 0x4, scoped, tag = 'scoped memory for tpu_custom_call.1']
    #allocation5 [shape = 's32[1]{0}', space=sflag, size = 0x4, scoped, tag = 'scoped memory for tpu_custom_call.1']
    #allocation6 [shape = 'u8[8192]{0}', space=vmem, size = 0x2000, scoped, tag = 'output window, operand 0, single buffered']
    %8 = vsyncpa [#allocation4], 0
    %9 = vsyncpa [#allocation5], 0
    // Predicated region
    $region2: #{tpu_custom_call.1} parent=1 // pred_check
      _
    $region3: #{tpu_custom_call.1} parent=1 // pred_check_branch
      %11 = sbr.rel (0) target = $region5
    $region4: #{tpu_custom_call.1} parent=1 // pred_region
      _
    $region5: #{tpu_custom_call.1} parent=1 // pred_fallthru
      _
    // Predicated region
    $region6: #{tpu_custom_call.1} parent=1 // pred_check
      _
    $region7: #{tpu_custom_call.1} parent=1 // pred_check_branch
      %13 = sbr.rel (0) target = $region9
    $region8: #{tpu_custom_call.1} parent=1 // pred_region
      %15 = vsyncadd [#allocation4], 0
      %s16 = sshll.u32 %s1, 4
      %s17 = int_to_ptr.hbm [resolvable:$true] %s16
      %s18 = sshll.u32 [#allocation3], 4
      %s19 = int_to_ptr.vmem [resolvable:$true] %s18
      %24 = dma.hbm_to_vmem [thread:$0]  %s17, 256, %s19, [#allocation4], 128, 128, 8
    $region9: #{tpu_custom_call.1} parent=1 // pred_fallthru
      _
    // Predicated region
    $region10: #{tpu_custom_call.1} parent=1 // pred_check
      _
    $region11: #{tpu_custom_call.1} parent=1 // pred_check_branch
      %26 = sbr.rel (0) target = $region13
    $region12: #{tpu_custom_call.1} parent=1 // pred_region
      %28 = dma.done [#allocation4], 256
    $region13: #{tpu_custom_call.1} parent=1 // pred_fallthru
      _
    %v29 = vlaneseq
    %v30 = vshrl.u32 %v29, 7
    %v31 = vadd.s32 %v30, 8
    %v32 = vlaneseq
    %v33 = vand.u32 %v32, 127
    %s34 = smul.u32 0, 16
    %v35 = vstv %s34
    %v36 = vadd.s32 %v35, %v30
    %v37 = vadd.s32 %v35, %v31
    %v38 = vmul.u32 %v36, 128
    %v39 = vmul.u32 %v37, 128
    %v40 = vadd.s32 %v38, %v33
    %v41 = vadd.s32 %v39, %v33
    %s42 = sld [smem:[#allocation2]]
    %s43 = smul.u32 %s42, 2654435769
    %v44 = vstv %s43
    %v45 = vadd.s32 %v40, %v44
    %v46 = vadd.s32 %v41, %v44
    %v47 = vshrl.u32 %v45, 16
    %v48 = vshrl.u32 %v46, 16
    %v49 = vxor.u32 %v45, %v47
    %v50 = vxor.u32 %v46, %v48
    %v51 = vmul.u32 %v49, 2146121005
    %v52 = vmul.u32 %v50, 2146121005
    %v53 = vshrl.u32 %v51, 15
    %v54 = vshrl.u32 %v52, 15
    %v55 = vxor.u32 %v51, %v53
    %v56 = vxor.u32 %v52, %v54
    %v57 = vmul.u32 %v55, 2221713035
    %v58 = vmul.u32 %v56, 2221713035
    %v59 = vshrl.u32 %v57, 16
    %v60 = vshrl.u32 %v58, 16
    %v61 = vxor.u32 %v57, %v59
    %v62 = vxor.u32 %v58, %v60
    %v63 = vshrl.u32 %v61, 1
    %v64 = vshrl.u32 %v62, 1
    %vm65 = vcmp.ge.s32.totalorder %v63, 1073741824
    %vm66 = vcmp.ge.s32.totalorder %v64, 1073741824
    %v67 = vld [vmem:[#allocation3] sm:$0xff]
    %v68 = vld [vmem:[#allocation3 + $0x8] sm:$0xff]
    %v69 = vmul.f32 %v67, 2.0
    %v70 = vmul.f32 %v68, 2.0
    %v71 = vsel %vm65, %v69, 0.0
    %v72 = vsel %vm66, %v70, 0.0
    %73 = vst [vmem:[#allocation6] sm:$0xff] %v71
    %74 = vst [vmem:[#allocation6 + $0x8] sm:$0xff] %v72
    // Predicated region
    $region14: #{tpu_custom_call.1} parent=1 // pred_check
      _
    $region15: #{tpu_custom_call.1} parent=1 // pred_check_branch
      %76 = sbr.rel (0) target = $region17
    $region16: #{tpu_custom_call.1} parent=1 // pred_region
      %78 = vsyncadd [#allocation5], 0
      %s79 = sshll.u32 [#allocation6], 4
      %s80 = int_to_ptr.vmem [resolvable:$true] %s79
      %s81 = sshll.u32 %s2, 4
      %s82 = int_to_ptr.hbm [resolvable:$true] %s81
      %87 = dma.vmem_to_hbm [thread:$0]  %s80, 256, %s82, [#allocation5], 128, 128, 8
    $region17: #{tpu_custom_call.1} parent=1 // pred_fallthru
      _
    // Predicated region
    $region18: #{tpu_custom_call.1} parent=1 // pred_check
      _
    $region19: #{tpu_custom_call.1} parent=1 // pred_check_branch
      %89 = sbr.rel (0) target = $region21
    $region20: #{tpu_custom_call.1} parent=1 // pred_region
      %91 = dma.done [#allocation5], 256
    $region21: #{tpu_custom_call.1} parent=1 // pred_fallthru
      _
    %92 = vsyncpa [#allocation4], 1
    %93 = vsyncpa [#allocation5], 1

</llo_original>
